<compile_context>
chip_gen: v7x
topology: tpu7x:2x2x1
jax: 0.10.0
libtpu: 0.0.40
codegen_flags: <defaults>
</compile_context>

<pallas_src>
import jax
import jax.numpy as jnp
from jax import lax
from jax.experimental import pallas as pl
from jax.experimental.pallas import tpu as pltpu

VOCAB = 30000
MAX_POS = 5
N_SEG = 3
HIDDEN = 512
EPS = 1e-5        # nn.LayerNorm default eps


def _make_kernel(rows, chunk):
    """Build a kernel specialized for (rows-per-tile, chunk-per-DMA-stage)."""
    n_chunks = rows // chunk
    unroll = 8                            # chunk is always a multiple of 8

    def kernel(tok_ids,                   # SMEM scalar-prefetch: (n_pad,) int32
               onehot_ref,                # VMEM (rows, 16) f32 block
               cat_tbl_ref,               # VMEM (16, 512) f32, grid-resident
               gamma_ref, beta_ref,       # VMEM (1, 512) f32, grid-resident
               tok_hbm,                   # HBM (VOCAB, 512) f32
               out_ref,                   # VMEM (rows, 512) f32 block
               tbuf, sem):                # VMEM (2, chunk, 512) f32, DMA sem (2,)
        i = pl.program_id(0)
        base = i * rows                   # first flattened token of this tile

        def issue(c_idx, slot):
            # Gather `chunk` token-embedding rows into tbuf[slot]; one DMA per
            # row, all signaling sem[slot].  Issue loop unrolled by 8 so the
            # scalar/misc slots aren't throttled by per-row loop branches.
            @pl.loop(0, chunk // unroll)
            def _(g):
                g0 = pl.multiple_of(g * unroll, unroll)
                for u in range(unroll):
                    r = g0 + u
                    tid = tok_ids[base + c_idx * chunk + r]
                    pltpu.make_async_copy(
                        tok_hbm.at[pl.ds(tid, 1), :],
                        tbuf.at[slot, pl.ds(r, 1), :],
                        sem.at[slot],
                    ).start()

        def wait(slot):
            # One aggregate wait per chunk: total bytes == sum of the `chunk`
            # (1, HIDDEN) row copies signaled on sem[slot].
            pltpu.make_async_copy(
                tok_hbm.at[pl.ds(0, chunk), :],
                tbuf.at[slot],
                sem.at[slot],
            ).wait()

        # Prime the first chunk's gather.
        issue(0, 0)

        # Hoist small resident operands out of the chunk loop.
        gamma = gamma_ref[...]            # (1, HIDDEN)
        beta = beta_ref[...]
        cat_tbl = cat_tbl_ref[...]        # (16, HIDDEN)  [pos|seg hi ; pos|seg lo]

        for c in range(n_chunks):         # static, <= 4 iterations
            slot = c & 1
            if c + 1 < n_chunks:
                issue(c + 1, 1 - slot)    # prefetch next chunk (overlaps compute)
            wait(slot)

            r0 = c * chunk
            tok_e = tbuf[slot, :, :]                           # (chunk, HIDDEN)
            oh = onehot_ref[pl.ds(r0, chunk), :]               # (chunk, 16)

            # pos+seg gather as one small MXU matmul.  Exact to f32: one-hot
            # entries and the hi-half of the table are bf16-representable, and
            # the lo-half carries the f32 residual (see wrapper).
            ps_e = jnp.dot(oh, cat_tbl, preferred_element_type=jnp.float32)

            # Sum + LayerNorm over hidden dim.
            e = tok_e + ps_e
            mean = jnp.mean(e, axis=-1, keepdims=True)
            var = jnp.mean(jnp.square(e - mean), axis=-1, keepdims=True)
            normed = (e - mean) * lax.rsqrt(var + EPS)
            out_ref[pl.ds(r0, chunk), :] = normed * gamma + beta

    return kernel


def embedding_forward(x, seg, tok_table, pos_table, seg_table, gamma, beta,
                      rows=512, chunk=128):
    B, S = x.shape
    if S > MAX_POS:
        raise ValueError(f"sequence length {S} exceeds pos_embed size {MAX_POS}")

    n = B * S
    # Tile height: up to `rows`, multiple of 8, no gross over-padding of tiny inputs.
    rows = max(8, min(rows, pl.cdiv(n, 8) * 8))
    if rows % chunk != 0:                 # keep chunk | rows (both multiples of 8)
        chunk = next(c for c in (128, 64, 32, 16, 8) if rows % c == 0)
    n_pad = pl.cdiv(n, rows) * rows
    pad = n_pad - n

    pos = jnp.broadcast_to(jnp.arange(S, dtype=jnp.int32)[None, :], (B, S))

    tok_flat = jnp.clip(x.reshape(-1).astype(jnp.int32), 0, VOCAB - 1)
    pos_flat = pos.reshape(-1)
    seg_flat = seg.reshape(-1).astype(jnp.int32)
    if pad:
        z = jnp.zeros((pad,), jnp.int32)
        tok_flat = jnp.concatenate([tok_flat, z])
        pos_flat = jnp.concatenate([pos_flat, z])
        seg_flat = jnp.concatenate([seg_flat, z])

    # pos/seg gather becomes a tiny MXU matmul: one-hot (n_pad,16) @ table (16,512).
    # The table holds the bf16-rounded half of concat(pos,seg) plus the f32
    # residual, and the one-hot is duplicated across both halves, so the matmul
    # result equals the f32 table rows even under single-pass-bf16 f32 matmuls.
    oh8 = jnp.concatenate(
        [jax.nn.one_hot(pos_flat, MAX_POS, dtype=jnp.float32),
         jax.nn.one_hot(seg_flat, N_SEG, dtype=jnp.float32)], axis=1)   # (n_pad, 8)
    onehot = jnp.concatenate([oh8, oh8], axis=1)                        # (n_pad, 16)
    cat8 = jnp.concatenate([pos_table, seg_table], axis=0)              # (8, 512)
    cat_hi = cat8.astype(jnp.bfloat16).astype(jnp.float32)
    cat_lo = cat8 - cat_hi
    cat_tbl = jnp.concatenate([cat_hi, cat_lo], axis=0)                 # (16, 512)

    kernel = _make_kernel(rows, chunk)

    out = pl.pallas_call(
        kernel,
        out_shape=jax.ShapeDtypeStruct((n_pad, HIDDEN), jnp.float32),
        grid_spec=pltpu.PrefetchScalarGridSpec(
            # Token ids -> SMEM (1-D, pads to next_pow2(4*n_pad) bytes; fine at
            # these sizes — switch to a per-tile SMEM-blocked input for very
            # large B*S to keep SMEM use constant).
            num_scalar_prefetch=1,
            grid=(n_pad // rows,),
            in_specs=[
                pl.BlockSpec((rows, 16), lambda i, *_: (i, 0)),          # one-hot
                pl.BlockSpec((16, HIDDEN), lambda i, *_: (0, 0)),        # pos/seg table (resident)
                pl.BlockSpec((1, HIDDEN), lambda i, *_: (0, 0)),         # gamma
                pl.BlockSpec((1, HIDDEN), lambda i, *_: (0, 0)),         # beta
                pl.BlockSpec(memory_space=pl.ANY),                       # token table (HBM)
            ],
            out_specs=pl.BlockSpec((rows, HIDDEN), lambda i, *_: (i, 0)),
            scratch_shapes=[
                pltpu.VMEM((2, chunk, HIDDEN), jnp.float32),             # double-buffered gather
                pltpu.SemaphoreType.DMA((2,)),                           # one sem per slot
            ],
        ),
        compiler_params=pltpu.CompilerParams(
            dimension_semantics=("parallel",)),          # self-contained steps -> megacore-safe
    )(tok_flat, onehot, cat_tbl,
      gamma.reshape(1, HIDDEN), beta.reshape(1, HIDDEN), tok_table)

    return out[:n].reshape(B, S, HIDDEN)


def embedding_reference(x, seg, tok_table, pos_table, seg_table, gamma, beta):
    B, S = x.shape
    pos = jnp.broadcast_to(jnp.arange(S, dtype=jnp.int32)[None, :], (B, S))
    e = tok_table[x] + pos_table[pos] + seg_table[seg]
    mean = jnp.mean(e, axis=-1, keepdims=True)
    var = jnp.mean(jnp.square(e - mean), axis=-1, keepdims=True)
    return (e - mean) * lax.rsqrt(var + EPS) * gamma + beta


if __name__ == "__main__":
    key = jax.random.PRNGKey(0)
    k_tok, k_pos, k_seg, k_x, k_s, k_x2, k_s2 = jax.random.split(key, 7)

    # Deterministic synthetic parameters (shapes from the module __init__).
    tok_table = (0.02 * jax.random.normal(k_tok, (VOCAB, HIDDEN))).astype(jnp.float32)
    pos_table = (0.02 * jax.random.normal(k_pos, (MAX_POS, HIDDEN))).astype(jnp.float32)
    seg_table = (0.02 * jax.random.normal(k_seg, (N_SEG, HIDDEN))).astype(jnp.float32)
    gamma = jnp.ones((HIDDEN,), jnp.float32)    # nn.LayerNorm default weight
    beta = jnp.zeros((HIDDEN,), jnp.float32)    # nn.LayerNorm default bias

    # Small example (S <= 5 because pos_embed only has 5 positions).
    B, S = 2, 4
    x = jax.random.randint(k_x, (B, S), 0, VOCAB, dtype=jnp.int32)
    seg = jax.random.randint(k_s, (B, S), 0, N_SEG, dtype=jnp.int32)

    out = embedding_forward(x, seg, tok_table, pos_table, seg_table, gamma, beta)
    out = jax.block_until_ready(out)
    ref = embedding_reference(x, seg, tok_table, pos_table, seg_table, gamma, beta)
    assert out.shape == (B, S, HIDDEN) and out.dtype == jnp.float32
    assert jnp.allclose(out, ref, atol=1e-4, rtol=1e-4), \
        f"max abs err = {float(jnp.max(jnp.abs(out - ref)))}"

    # Larger case: multi-step grid, intra-step DMA double-buffering, tail padding.
    B2, S2 = 200, 5
    x2 = jax.random.randint(k_x2, (B2, S2), 0, VOCAB, dtype=jnp.int32)
    seg2 = jax.random.randint(k_s2, (B2, S2), 0, N_SEG, dtype=jnp.int32)
    out2 = embedding_forward(x2, seg2, tok_table, pos_table, seg_table, gamma, beta)
    out2 = jax.block_until_ready(out2)
    ref2 = embedding_reference(x2, seg2, tok_table, pos_table, seg_table, gamma, beta)
    assert jnp.allclose(out2, ref2, atol=1e-4, rtol=1e-4), \
        f"max abs err = {float(jnp.max(jnp.abs(out2 - ref2)))}"

    print("KERNEL_OK")
</pallas_src>

<mosaic_0001>
module attributes {stable_mosaic.version = 11 : i64} {
  func.func @kernel(%arg0: i32, %arg1: memref<8xi32, #tpu.memory_space<smem>>, %arg2: memref<8x16xf32, #tpu.memory_space<vmem>>, %arg3: memref<16x512xf32, #tpu.memory_space<vmem>>, %arg4: memref<1x512xf32, #tpu.memory_space<vmem>>, %arg5: memref<1x512xf32, #tpu.memory_space<vmem>>, %arg6: memref<30000x512xf32, #tpu.memory_space<any>>, %arg7: memref<8x512xf32, #tpu.memory_space<vmem>>, %arg8: memref<2x8x512xf32, #tpu.memory_space<vmem>>, %arg9: memref<2x!tpu.dma_semaphore, #tpu.memory_space<semaphore_mem>>) attributes {dimension_semantics = [#tpu.dimension_semantics<parallel>], iteration_bounds = array<i64: 1>, scalar_prefetch = 1 : i64, scratch_operands = 2 : i64, tpu.core_type = #tpu.core_type<tc>, window_params = [{transform_indices = @transform_0, window_bounds = array<i64: 8, 16>}, {pipeline_mode = #tpu.pipeline_mode<synchronous>, transform_indices = @transform_1, window_bounds = array<i64: 16, 512>}, {pipeline_mode = #tpu.pipeline_mode<synchronous>, transform_indices = @transform_2, window_bounds = array<i64: 1, 512>}, {pipeline_mode = #tpu.pipeline_mode<synchronous>, transform_indices = @transform_3, window_bounds = array<i64: 1, 512>}, {}, {transform_indices = @transform_5, window_bounds = array<i64: 8, 512>}]} {
    %c8_i32 = arith.constant 8 : i32
    %0 = arith.muli %arg0, %c8_i32 : i32
    %c0_i32 = arith.constant 0 : i32
    %c1_i32 = arith.constant 1 : i32
    %1 = arith.muli %c0_i32, %c1_i32 : i32
    %c0_i32_0 = arith.constant 0 : i32
    %2 = arith.addi %c0_i32_0, %1 : i32
    %c8_i32_1 = arith.constant 8 : i32
    %3 = arith.muli %2, %c8_i32_1 : i32
    %4 = tpu.assume_multiple %3, 8 : i32
    %c0_i32_2 = arith.constant 0 : i32
    %5 = arith.addi %4, %c0_i32_2 : i32
    %c0_i32_3 = arith.constant 0 : i32
    %6 = arith.addi %0, %c0_i32_3 : i32
    %7 = arith.addi %6, %5 : i32
    %8 = arith.index_cast %7 : i32 to index
    %9 = memref.load %arg1[%8] : memref<8xi32, #tpu.memory_space<smem>>
    %c0_i32_4 = arith.constant 0 : i32
    %c0_i32_5 = arith.constant 0 : i32
    %c0_i32_6 = arith.constant 0 : i32
    %10 = tpu.memref_slice %arg6[%9, %c0_i32_6] : memref<30000x512xf32, #tpu.memory_space<any>> -> memref<1x512xf32, #tpu.memory_space<any>>
    %c0_i32_7 = arith.constant 0 : i32
    %11 = tpu.memref_slice %arg8[%c0_i32_4, %5, %c0_i32_7] : memref<2x8x512xf32, #tpu.memory_space<vmem>> -> memref<1x1x512xf32, #tpu.memory_space<vmem>>
    %12 = tpu.memref_squeeze %11 : memref<1x1x512xf32, #tpu.memory_space<vmem>> -> memref<1x512xf32, #tpu.memory_space<vmem>>
    %13 = tpu.memref_slice %arg9[%c0_i32_5] : memref<2x!tpu.dma_semaphore, #tpu.memory_space<semaphore_mem>> -> memref<1x!tpu.dma_semaphore, #tpu.memory_space<semaphore_mem>>
    %14 = tpu.memref_squeeze %13 : memref<1x!tpu.dma_semaphore, #tpu.memory_space<semaphore_mem>> -> memref<!tpu.dma_semaphore, #tpu.memory_space<semaphore_mem>>
    tpu.enqueue_dma source(%10 : memref<1x512xf32, #tpu.memory_space<any>>) target(%12 : memref<1x512xf32, #tpu.memory_space<vmem>>) target_semaphore(%14 : memref<!tpu.dma_semaphore, #tpu.memory_space<semaphore_mem>>)
    %c1_i32_8 = arith.constant 1 : i32
    %15 = arith.addi %4, %c1_i32_8 : i32
    %c0_i32_9 = arith.constant 0 : i32
    %16 = arith.addi %0, %c0_i32_9 : i32
    %17 = arith.addi %16, %15 : i32
    %18 = arith.index_cast %17 : i32 to index
    %19 = memref.load %arg1[%18] : memref<8xi32, #tpu.memory_space<smem>>
    %c0_i32_10 = arith.constant 0 : i32
    %c0_i32_11 = arith.constant 0 : i32
    %c0_i32_12 = arith.constant 0 : i32
    %20 = tpu.memref_slice %arg6[%19, %c0_i32_12] : memref<30000x512xf32, #tpu.memory_space<any>> -> memref<1x512xf32, #tpu.memory_space<any>>
    %c0_i32_13 = arith.constant 0 : i32
    %21 = tpu.memref_slice %arg8[%c0_i32_10, %15, %c0_i32_13] : memref<2x8x512xf32, #tpu.memory_space<vmem>> -> memref<1x1x512xf32, #tpu.memory_space<vmem>>
    %22 = tpu.memref_squeeze %21 : memref<1x1x512xf32, #tpu.memory_space<vmem>> -> memref<1x512xf32, #tpu.memory_space<vmem>>
    %23 = tpu.memref_slice %arg9[%c0_i32_11] : memref<2x!tpu.dma_semaphore, #tpu.memory_space<semaphore_mem>> -> memref<1x!tpu.dma_semaphore, #tpu.memory_space<semaphore_mem>>
    %24 = tpu.memref_squeeze %23 : memref<1x!tpu.dma_semaphore, #tpu.memory_space<semaphore_mem>> -> memref<!tpu.dma_semaphore, #tpu.memory_space<semaphore_mem>>
    tpu.enqueue_dma source(%20 : memref<1x512xf32, #tpu.memory_space<any>>) target(%22 : memref<1x512xf32, #tpu.memory_space<vmem>>) target_semaphore(%24 : memref<!tpu.dma_semaphore, #tpu.memory_space<semaphore_mem>>)
    %c2_i32 = arith.constant 2 : i32
    %25 = arith.addi %4, %c2_i32 : i32
    %c0_i32_14 = arith.constant 0 : i32
    %26 = arith.addi %0, %c0_i32_14 : i32
    %27 = arith.addi %26, %25 : i32
    %28 = arith.index_cast %27 : i32 to index
    %29 = memref.load %arg1[%28] : memref<8xi32, #tpu.memory_space<smem>>
    %c0_i32_15 = arith.constant 0 : i32
    %c0_i32_16 = arith.constant 0 : i32
    %c0_i32_17 = arith.constant 0 : i32
    %30 = tpu.memref_slice %arg6[%29, %c0_i32_17] : memref<30000x512xf32, #tpu.memory_space<any>> -> memref<1x512xf32, #tpu.memory_space<any>>
    %c0_i32_18 = arith.constant 0 : i32
    %31 = tpu.memref_slice %arg8[%c0_i32_15, %25, %c0_i32_18] : memref<2x8x512xf32, #tpu.memory_space<vmem>> -> memref<1x1x512xf32, #tpu.memory_space<vmem>>
    %32 = tpu.memref_squeeze %31 : memref<1x1x512xf32, #tpu.memory_space<vmem>> -> memref<1x512xf32, #tpu.memory_space<vmem>>
    %33 = tpu.memref_slice %arg9[%c0_i32_16] : memref<2x!tpu.dma_semaphore, #tpu.memory_space<semaphore_mem>> -> memref<1x!tpu.dma_semaphore, #tpu.memory_space<semaphore_mem>>
    %34 = tpu.memref_squeeze %33 : memref<1x!tpu.dma_semaphore, #tpu.memory_space<semaphore_mem>> -> memref<!tpu.dma_semaphore, #tpu.memory_space<semaphore_mem>>
    tpu.enqueue_dma source(%30 : memref<1x512xf32, #tpu.memory_space<any>>) target(%32 : memref<1x512xf32, #tpu.memory_space<vmem>>) target_semaphore(%34 : memref<!tpu.dma_semaphore, #tpu.memory_space<semaphore_mem>>)
    %c3_i32 = arith.constant 3 : i32
    %35 = arith.addi %4, %c3_i32 : i32
    %c0_i32_19 = arith.constant 0 : i32
    %36 = arith.addi %0, %c0_i32_19 : i32
    %37 = arith.addi %36, %35 : i32
    %38 = arith.index_cast %37 : i32 to index
    %39 = memref.load %arg1[%38] : memref<8xi32, #tpu.memory_space<smem>>
    %c0_i32_20 = arith.constant 0 : i32
    %c0_i32_21 = arith.constant 0 : i32
    %c0_i32_22 = arith.constant 0 : i32
    %40 = tpu.memref_slice %arg6[%39, %c0_i32_22] : memref<30000x512xf32, #tpu.memory_space<any>> -> memref<1x512xf32, #tpu.memory_space<any>>
    %c0_i32_23 = arith.constant 0 : i32
    %41 = tpu.memref_slice %arg8[%c0_i32_20, %35, %c0_i32_23] : memref<2x8x512xf32, #tpu.memory_space<vmem>> -> memref<1x1x512xf32, #tpu.memory_space<vmem>>
    %42 = tpu.memref_squeeze %41 : memref<1x1x512xf32, #tpu.memory_space<vmem>> -> memref<1x512xf32, #tpu.memory_space<vmem>>
    %43 = tpu.memref_slice %arg9[%c0_i32_21] : memref<2x!tpu.dma_semaphore, #tpu.memory_space<semaphore_mem>> -> memref<1x!tpu.dma_semaphore, #tpu.memory_space<semaphore_mem>>
    %44 = tpu.memref_squeeze %43 : memref<1x!tpu.dma_semaphore, #tpu.memory_space<semaphore_mem>> -> memref<!tpu.dma_semaphore, #tpu.memory_space<semaphore_mem>>
    tpu.enqueue_dma source(%40 : memref<1x512xf32, #tpu.memory_space<any>>) target(%42 : memref<1x512xf32, #tpu.memory_space<vmem>>) target_semaphore(%44 : memref<!tpu.dma_semaphore, #tpu.memory_space<semaphore_mem>>)
    %c4_i32 = arith.constant 4 : i32
    %45 = arith.addi %4, %c4_i32 : i32
    %c0_i32_24 = arith.constant 0 : i32
    %46 = arith.addi %0, %c0_i32_24 : i32
    %47 = arith.addi %46, %45 : i32
    %48 = arith.index_cast %47 : i32 to index
    %49 = memref.load %arg1[%48] : memref<8xi32, #tpu.memory_space<smem>>
    %c0_i32_25 = arith.constant 0 : i32
    %c0_i32_26 = arith.constant 0 : i32
    %c0_i32_27 = arith.constant 0 : i32
    %50 = tpu.memref_slice %arg6[%49, %c0_i32_27] : memref<30000x512xf32, #tpu.memory_space<any>> -> memref<1x512xf32, #tpu.memory_space<any>>
    %c0_i32_28 = arith.constant 0 : i32
    %51 = tpu.memref_slice %arg8[%c0_i32_25, %45, %c0_i32_28] : memref<2x8x512xf32, #tpu.memory_space<vmem>> -> memref<1x1x512xf32, #tpu.memory_space<vmem>>
    %52 = tpu.memref_squeeze %51 : memref<1x1x512xf32, #tpu.memory_space<vmem>> -> memref<1x512xf32, #tpu.memory_space<vmem>>
    %53 = tpu.memref_slice %arg9[%c0_i32_26] : memref<2x!tpu.dma_semaphore, #tpu.memory_space<semaphore_mem>> -> memref<1x!tpu.dma_semaphore, #tpu.memory_space<semaphore_mem>>
    %54 = tpu.memref_squeeze %53 : memref<1x!tpu.dma_semaphore, #tpu.memory_space<semaphore_mem>> -> memref<!tpu.dma_semaphore, #tpu.memory_space<semaphore_mem>>
    tpu.enqueue_dma source(%50 : memref<1x512xf32, #tpu.memory_space<any>>) target(%52 : memref<1x512xf32, #tpu.memory_space<vmem>>) target_semaphore(%54 : memref<!tpu.dma_semaphore, #tpu.memory_space<semaphore_mem>>)
    %c5_i32 = arith.constant 5 : i32
    %55 = arith.addi %4, %c5_i32 : i32
    %c0_i32_29 = arith.constant 0 : i32
    %56 = arith.addi %0, %c0_i32_29 : i32
    %57 = arith.addi %56, %55 : i32
    %58 = arith.index_cast %57 : i32 to index
    %59 = memref.load %arg1[%58] : memref<8xi32, #tpu.memory_space<smem>>
    %c0_i32_30 = arith.constant 0 : i32
    %c0_i32_31 = arith.constant 0 : i32
    %c0_i32_32 = arith.constant 0 : i32
    %60 = tpu.memref_slice %arg6[%59, %c0_i32_32] : memref<30000x512xf32, #tpu.memory_space<any>> -> memref<1x512xf32, #tpu.memory_space<any>>
    %c0_i32_33 = arith.constant 0 : i32
    %61 = tpu.memref_slice %arg8[%c0_i32_30, %55, %c0_i32_33] : memref<2x8x512xf32, #tpu.memory_space<vmem>> -> memref<1x1x512xf32, #tpu.memory_space<vmem>>
    %62 = tpu.memref_squeeze %61 : memref<1x1x512xf32, #tpu.memory_space<vmem>> -> memref<1x512xf32, #tpu.memory_space<vmem>>
    %63 = tpu.memref_slice %arg9[%c0_i32_31] : memref<2x!tpu.dma_semaphore, #tpu.memory_space<semaphore_mem>> -> memref<1x!tpu.dma_semaphore, #tpu.memory_space<semaphore_mem>>
    %64 = tpu.memref_squeeze %63 : memref<1x!tpu.dma_semaphore, #tpu.memory_space<semaphore_mem>> -> memref<!tpu.dma_semaphore, #tpu.memory_space<semaphore_mem>>
    tpu.enqueue_dma source(%60 : memref<1x512xf32, #tpu.memory_space<any>>) target(%62 : memref<1x512xf32, #tpu.memory_space<vmem>>) target_semaphore(%64 : memref<!tpu.dma_semaphore, #tpu.memory_space<semaphore_mem>>)
    %c6_i32 = arith.constant 6 : i32
    %65 = arith.addi %4, %c6_i32 : i32
    %c0_i32_34 = arith.constant 0 : i32
    %66 = arith.addi %0, %c0_i32_34 : i32
    %67 = arith.addi %66, %65 : i32
    %68 = arith.index_cast %67 : i32 to index
    %69 = memref.load %arg1[%68] : memref<8xi32, #tpu.memory_space<smem>>
    %c0_i32_35 = arith.constant 0 : i32
    %c0_i32_36 = arith.constant 0 : i32
    %c0_i32_37 = arith.constant 0 : i32
    %70 = tpu.memref_slice %arg6[%69, %c0_i32_37] : memref<30000x512xf32, #tpu.memory_space<any>> -> memref<1x512xf32, #tpu.memory_space<any>>
    %c0_i32_38 = arith.constant 0 : i32
    %71 = tpu.memref_slice %arg8[%c0_i32_35, %65, %c0_i32_38] : memref<2x8x512xf32, #tpu.memory_space<vmem>> -> memref<1x1x512xf32, #tpu.memory_space<vmem>>
    %72 = tpu.memref_squeeze %71 : memref<1x1x512xf32, #tpu.memory_space<vmem>> -> memref<1x512xf32, #tpu.memory_space<vmem>>
    %73 = tpu.memref_slice %arg9[%c0_i32_36] : memref<2x!tpu.dma_semaphore, #tpu.memory_space<semaphore_mem>> -> memref<1x!tpu.dma_semaphore, #tpu.memory_space<semaphore_mem>>
    %74 = tpu.memref_squeeze %73 : memref<1x!tpu.dma_semaphore, #tpu.memory_space<semaphore_mem>> -> memref<!tpu.dma_semaphore, #tpu.memory_space<semaphore_mem>>
    tpu.enqueue_dma source(%70 : memref<1x512xf32, #tpu.memory_space<any>>) target(%72 : memref<1x512xf32, #tpu.memory_space<vmem>>) target_semaphore(%74 : memref<!tpu.dma_semaphore, #tpu.memory_space<semaphore_mem>>)
    %c7_i32 = arith.constant 7 : i32
    %75 = arith.addi %4, %c7_i32 : i32
    %c0_i32_39 = arith.constant 0 : i32
    %76 = arith.addi %0, %c0_i32_39 : i32
    %77 = arith.addi %76, %75 : i32
    %78 = arith.index_cast %77 : i32 to index
    %79 = memref.load %arg1[%78] : memref<8xi32, #tpu.memory_space<smem>>
    %c0_i32_40 = arith.constant 0 : i32
    %c0_i32_41 = arith.constant 0 : i32
    %c0_i32_42 = arith.constant 0 : i32
    %80 = tpu.memref_slice %arg6[%79, %c0_i32_42] : memref<30000x512xf32, #tpu.memory_space<any>> -> memref<1x512xf32, #tpu.memory_space<any>>
    %c0_i32_43 = arith.constant 0 : i32
    %81 = tpu.memref_slice %arg8[%c0_i32_40, %75, %c0_i32_43] : memref<2x8x512xf32, #tpu.memory_space<vmem>> -> memref<1x1x512xf32, #tpu.memory_space<vmem>>
    %82 = tpu.memref_squeeze %81 : memref<1x1x512xf32, #tpu.memory_space<vmem>> -> memref<1x512xf32, #tpu.memory_space<vmem>>
    %83 = tpu.memref_slice %arg9[%c0_i32_41] : memref<2x!tpu.dma_semaphore, #tpu.memory_space<semaphore_mem>> -> memref<1x!tpu.dma_semaphore, #tpu.memory_space<semaphore_mem>>
    %84 = tpu.memref_squeeze %83 : memref<1x!tpu.dma_semaphore, #tpu.memory_space<semaphore_mem>> -> memref<!tpu.dma_semaphore, #tpu.memory_space<semaphore_mem>>
    tpu.enqueue_dma source(%80 : memref<1x512xf32, #tpu.memory_space<any>>) target(%82 : memref<1x512xf32, #tpu.memory_space<vmem>>) target_semaphore(%84 : memref<!tpu.dma_semaphore, #tpu.memory_space<semaphore_mem>>)
    %c1_i32_44 = arith.constant 1 : i32
    %c0 = arith.constant 0 : index
    %c0_45 = arith.constant 0 : index
    %85 = vector.load %arg4[%c0, %c0_45] : memref<1x512xf32, #tpu.memory_space<vmem>>, vector<1x512xf32>
    %c0_46 = arith.constant 0 : index
    %c0_47 = arith.constant 0 : index
    %86 = vector.load %arg5[%c0_46, %c0_47] : memref<1x512xf32, #tpu.memory_space<vmem>>, vector<1x512xf32>
    %c0_48 = arith.constant 0 : index
    %c0_49 = arith.constant 0 : index
    %87 = vector.load %arg3[%c0_48, %c0_49] : memref<16x512xf32, #tpu.memory_space<vmem>>, vector<16x512xf32>
    %c0_i32_50 = arith.constant 0 : i32
    %c0_i32_51 = arith.constant 0 : i32
    %c0_i32_52 = arith.constant 0 : i32
    %c0_i32_53 = arith.constant 0 : i32
    %88 = tpu.memref_slice %arg6[%c0_i32_52, %c0_i32_53] : memref<30000x512xf32, #tpu.memory_space<any>> -> memref<8x512xf32, #tpu.memory_space<any>>
    %c0_i32_54 = arith.constant 0 : i32
    %c0_i32_55 = arith.constant 0 : i32
    %89 = tpu.memref_slice %arg8[%c0_i32_50, %c0_i32_54, %c0_i32_55] : memref<2x8x512xf32, #tpu.memory_space<vmem>> -> memref<1x8x512xf32, #tpu.memory_space<vmem>>
    %90 = tpu.memref_squeeze %89 : memref<1x8x512xf32, #tpu.memory_space<vmem>> -> memref<8x512xf32, #tpu.memory_space<vmem>>
    %91 = tpu.memref_slice %arg9[%c0_i32_51] : memref<2x!tpu.dma_semaphore, #tpu.memory_space<semaphore_mem>> -> memref<1x!tpu.dma_semaphore, #tpu.memory_space<semaphore_mem>>
    %92 = tpu.memref_squeeze %91 : memref<1x!tpu.dma_semaphore, #tpu.memory_space<semaphore_mem>> -> memref<!tpu.dma_semaphore, #tpu.memory_space<semaphore_mem>>
    tpu.wait_dma2 semaphore(%92 : memref<!tpu.dma_semaphore, #tpu.memory_space<semaphore_mem>>) src(%88 : memref<8x512xf32, #tpu.memory_space<any>>) dst(%90 : memref<8x512xf32, #tpu.memory_space<vmem>>)
    %c0_56 = arith.constant 0 : index
    %c0_57 = arith.constant 0 : index
    %c0_58 = arith.constant 0 : index
    %93 = vector.load %arg8[%c0_56, %c0_57, %c0_58] : memref<2x8x512xf32, #tpu.memory_space<vmem>>, vector<1x8x512xf32>
    %94 = vector.shape_cast %93 : vector<1x8x512xf32> to vector<8x512xf32>
    %c0_59 = arith.constant 0 : index
    %c0_60 = arith.constant 0 : index
    %95 = vector.load %arg2[%c0_59, %c0_60] : memref<8x16xf32, #tpu.memory_space<vmem>>, vector<8x16xf32>
    %cst = arith.constant dense<0.000000e+00> : vector<8x512xf32>
    %96 = tpu.matmul %95, %87, %cst {dimension_numbers = #tpu.dot_dimension_numbers<[1], [0], [0], [1], [0, 0, 1, 1], [], []>} : vector<8x16xf32>, vector<16x512xf32>, vector<8x512xf32> -> vector<8x512xf32>
    %97 = arith.addf %94, %96 : vector<8x512xf32>
    %cst_61 = arith.constant dense<0.000000e+00> : vector<8xf32>
    %98 = vector.multi_reduction <add>, %97, %cst_61 [1] : vector<8x512xf32> to vector<8xf32>
    %99 = vector.shape_cast %98 : vector<8xf32> to vector<8x1xf32>
    %cst_62 = arith.constant 5.120000e+02 : f32
    %100 = vector.broadcast %cst_62 : f32 to vector<8x1xf32>
    %101 = arith.divf %99, %100 : vector<8x1xf32>
    %102 = vector.broadcast %101 : vector<8x1xf32> to vector<8x512xf32>
    %103 = arith.subf %97, %102 : vector<8x512xf32>
    %104 = arith.mulf %103, %103 : vector<8x512xf32>
    %cst_63 = arith.constant dense<0.000000e+00> : vector<8xf32>
    %105 = vector.multi_reduction <add>, %104, %cst_63 [1] : vector<8x512xf32> to vector<8xf32>
    %106 = vector.shape_cast %105 : vector<8xf32> to vector<8x1xf32>
    %cst_64 = arith.constant 5.120000e+02 : f32
    %107 = vector.broadcast %cst_64 : f32 to vector<8x1xf32>
    %108 = arith.divf %106, %107 : vector<8x1xf32>
    %109 = vector.broadcast %101 : vector<8x1xf32> to vector<8x512xf32>
    %110 = arith.subf %97, %109 : vector<8x512xf32>
    %cst_65 = arith.constant 9.99999974E-6 : f32
    %111 = vector.broadcast %cst_65 : f32 to vector<8x1xf32>
    %112 = arith.addf %108, %111 : vector<8x1xf32>
    %113 = math.rsqrt %112 : vector<8x1xf32>
    %114 = vector.broadcast %113 : vector<8x1xf32> to vector<8x512xf32>
    %115 = arith.mulf %110, %114 : vector<8x512xf32>
    %116 = vector.broadcast %85 : vector<1x512xf32> to vector<8x512xf32>
    %117 = arith.mulf %115, %116 : vector<8x512xf32>
    %118 = vector.broadcast %86 : vector<1x512xf32> to vector<8x512xf32>
    %119 = arith.addf %117, %118 : vector<8x512xf32>
    %c0_66 = arith.constant 0 : index
    %c0_67 = arith.constant 0 : index
    %120 = vector.load %arg7[%c0_66, %c0_67] : memref<8x512xf32, #tpu.memory_space<vmem>>, vector<8x512xf32>
    tpu.vector_store %arg7[%c0_66, %c0_67], %119 {strides = array<i32>} : memref<8x512xf32, #tpu.memory_space<vmem>>, vector<8x512xf32>,
    return
  }
  func.func @transform_0(%arg0: i32, %arg1: memref<8xi32, #tpu.memory_space<smem>>) -> (i32, i32) {
    %c0_i32 = arith.constant 0 : i32
    %c0_i32_0 = arith.constant 0 : i32
    return %arg0, %c0_i32 : i32, i32
  }
  func.func @transform_1(%arg0: i32, %arg1: memref<8xi32, #tpu.memory_space<smem>>) -> (i32, i32) {
    %c0_i32 = arith.constant 0 : i32
    %c0_i32_0 = arith.constant 0 : i32
    %c0_i32_1 = arith.constant 0 : i32
    return %c0_i32, %c0_i32_0 : i32, i32
  }
  func.func @transform_2(%arg0: i32, %arg1: memref<8xi32, #tpu.memory_space<smem>>) -> (i32, i32) {
    %c0_i32 = arith.constant 0 : i32
    %c0_i32_0 = arith.constant 0 : i32
    %c0_i32_1 = arith.constant 0 : i32
    return %c0_i32, %c0_i32_0 : i32, i32
  }
  func.func @transform_3(%arg0: i32, %arg1: memref<8xi32, #tpu.memory_space<smem>>) -> (i32, i32) {
    %c0_i32 = arith.constant 0 : i32
    %c0_i32_0 = arith.constant 0 : i32
    %c0_i32_1 = arith.constant 0 : i32
    return %c0_i32, %c0_i32_0 : i32, i32
  }
  func.func @transform_5(%arg0: i32, %arg1: memref<8xi32, #tpu.memory_space<smem>>) -> (i32, i32) {
    %c0_i32 = arith.constant 0 : i32
    %c0_i32_0 = arith.constant 0 : i32
    return %arg0, %c0_i32 : i32, i32
  }
}

</mosaic_0001>

<llo_original>
// kernel: tpu_custom_call.1
$region0: #{tpu_custom_call.1}
  #allocation0 [shape = 'u32[]', space=smem, size = 0x4, offset = 0x4, fixed_abs, tag = 'smem constant byte address 0x4 - core index']
  #allocation1 [shape = 'u32[144,128]{1,0:T(1,128)}', space=vmem, size = 0x12000, scoped, tag = 'internal scratch']
  #allocation2 [shape = 'f32[2,8,512]{2,1,0:T(8,128)}', space=vmem, size = 0x8000, scoped, tag = 'scratch operand']
  #allocation3 [shape = 's32[2]{0}', space=sflag, size = 0x8, scoped, tag = 'scratch operand']
  #allocation4 [shape = 's32[1]{0}', space=sflag, size = 0x4, scoped, tag = 'scoped memory for tpu_custom_call.1']
  #allocation5 [shape = 'u8[512]{0}', space=smem, size = 0x200, scoped, tag = 'prefetched SMEM operand 0']
  #allocation15 [shape = 's32[]', space=sflag, size = 0x4, offset = 0, fixed_abs, tag = 'sflag constant byte address 0x0 - dummy sync flag']
  #allocation16 [shape = 's32[]', space=sflag, size = 0x4, offset = 0, fixed_abs, tag = 'sflag constant byte address 0x0 - dummy sync flag']
  #allocation17 [shape = 's32[]', space=sflag, size = 0x4, offset = 0, fixed_abs, tag = 'sflag constant byte address 0x0 - dummy sync flag']
  #allocation18 [shape = 's32[]', space=sflag, size = 0x4, offset = 0, fixed_abs, tag = 'sflag constant byte address 0x0 - dummy sync flag']
  #allocation19 [shape = 's32[]', space=sflag, size = 0x4, offset = 0, fixed_abs, tag = 'sflag constant byte address 0x0 - dummy sync flag']
  #allocation20 [shape = 's32[]', space=sflag, size = 0x4, offset = 0, fixed_abs, tag = 'sflag constant byte address 0x0 - dummy sync flag']
  #allocation21 [shape = 's32[]', space=sflag, size = 0x4, offset = 0, fixed_abs, tag = 'sflag constant byte address 0x0 - dummy sync flag']
  #allocation22 [shape = 's32[]', space=sflag, size = 0x4, offset = 0, fixed_abs, tag = 'sflag constant byte address 0x0 - dummy sync flag']
  %s0 = inlined_call_operand.hbm [shape: s32[8], index: 0, kind: input, shape index: {}]
  %s1 = inlined_call_operand.hbm [shape: f32[8,16], index: 1, kind: input, shape index: {}]
  %s2 = inlined_call_operand.hbm [shape: f32[16,512], index: 2, kind: input, shape index: {}]
  %s3 = inlined_call_operand.hbm [shape: f32[1,512], index: 3, kind: input, shape index: {}]
  %s4 = inlined_call_operand.hbm [shape: f32[1,512], index: 4, kind: input, shape index: {}]
  %s5 = inlined_call_operand.hbm [shape: f32[30000,512], index: 5, kind: input, shape index: {}]
  %s6 = inlined_call_operand.hbm [shape: f32[8,512], index: 6, kind: output, shape index: {}]
  %s7 = sld [smem:[#allocation0]]
  $region42: #{tpu_custom_call.1} parent=0
    _
  %s9 = ssub.s32 1, %s7
  %s10 = scalar_select 0, %s9, %s7
  %12 = dma.hbm_to_smem %s0, 16, [#allocation5], [#allocation4]
  %13 = dma.done [#allocation4], 16
  %14 = sfence
  $region1: #{tpu_custom_call.1} parent=0
    #allocation6 [shape = 'u8[4096]{0}', space=vmem, size = 0x1000, scoped, tag = 'input window, operand 1, single buffered']
    #allocation7 [shape = 's32[1]{0}', space=sflag, size = 0x4, scoped, tag = 'scoped memory for tpu_custom_call.1']
    #allocation8 [shape = 's32[1]{0}', space=sflag, size = 0x4, scoped, tag = 'scoped memory for tpu_custom_call.1']
    #allocation9 [shape = 'u8[32768]{0}', space=vmem, size = 0x8000, scoped, tag = 'input window, operand 2, single buffered']
    #allocation10 [shape = 's32[1]{0}', space=sflag, size = 0x4, scoped, tag = 'scoped memory for tpu_custom_call.1']
    #allocation11 [shape = 'u8[2048]{0}', space=vmem, size = 0x800, scoped, tag = 'input window, operand 3, single buffered']
    #allocation12 [shape = 'u8[2048]{0}', space=vmem, size = 0x800, scoped, tag = 'input window, operand 4, single buffered']
    #allocation13 [shape = 's32[1]{0}', space=sflag, size = 0x4, scoped, tag = 'scoped memory for tpu_custom_call.1']
    #allocation14 [shape = 'u8[16384]{0}', space=vmem, size = 0x4000, scoped, tag = 'output window, operand 0, single buffered']
    %15 = vsyncpa [#allocation7], 0
    %16 = vsyncpa [#allocation10], 0
    %17 = vsyncpa [#allocation13], 0
    %18 = vsyncpa [#allocation8], 0
    // Predicated region
    $region2: #{tpu_custom_call.1} parent=1 // pred_check
      _
    $region3: #{tpu_custom_call.1} parent=1 // pred_check_branch
      %20 = sbr.rel (0) target = $region5
    $region4: #{tpu_custom_call.1} parent=1 // pred_region
      %s22 = ssub.s32 128, 128
      %23 = vsyncadd [#allocation7], %s22
      %s25 = sshll.u32 [#allocation6], 4
      %s26 = int_to_ptr.vmem [resolvable:$true] %s25
      %28 = dma.hbm_to_vmem [thread:$0]  %s1, 128, %s26, [#allocation7]
    $region5: #{tpu_custom_call.1} parent=1 // pred_fallthru
      _
    // Predicated region
    $region6: #{tpu_custom_call.1} parent=1 // pred_check
      _
    $region7: #{tpu_custom_call.1} parent=1 // pred_check_branch
      %30 = sbr.rel (0) target = $region9
    $region8: #{tpu_custom_call.1} parent=1 // pred_region
      %s32 = ssub.s32 1024, 1024
      %33 = vsyncadd [#allocation10], %s32
      %s34 = sshll.u32 [#allocation9], 4
      %s35 = int_to_ptr.vmem [resolvable:$true] %s34
      %40 = dma.hbm_to_vmem [thread:$0]  %s2, 1024, %s35, [#allocation10], 512, 512, 32
    $region9: #{tpu_custom_call.1} parent=1 // pred_fallthru
      _
    // Predicated region
    $region10: #{tpu_custom_call.1} parent=1 // pred_check
      _
    $region11: #{tpu_custom_call.1} parent=1 // pred_check_branch
      %42 = sbr.rel (0) target = $region13
    $region12: #{tpu_custom_call.1} parent=1 // pred_region
      %s44 = ssub.s32 64, 64
      %45 = vsyncadd [#allocation10], %s44
      %s47 = sshll.u32 [#allocation11], 4
      %s48 = int_to_ptr.vmem [resolvable:$true] %s47
      %50 = dma.hbm_to_vmem [thread:$0]  %s3, 64, %s48, [#allocation10]
    $region13: #{tpu_custom_call.1} parent=1 // pred_fallthru
      _
    // Predicated region
    $region14: #{tpu_custom_call.1} parent=1 // pred_check
      _
    $region15: #{tpu_custom_call.1} parent=1 // pred_check_branch
      %52 = sbr.rel (0) target = $region17
    $region16: #{tpu_custom_call.1} parent=1 // pred_region
      %s54 = ssub.s32 64, 64
      %55 = vsyncadd [#allocation13], %s54
      %s57 = sshll.u32 [#allocation12], 4
      %s58 = int_to_ptr.vmem [resolvable:$true] %s57
      %60 = dma.hbm_to_vmem [thread:$0]  %s4, 64, %s58, [#allocation13]
    $region17: #{tpu_custom_call.1} parent=1 // pred_fallthru
      _
    // Predicated region
    $region18: #{tpu_custom_call.1} parent=1 // pred_check
      _
    $region19: #{tpu_custom_call.1} parent=1 // pred_check_branch
      %62 = sbr.rel (0) target = $region21
    $region20: #{tpu_custom_call.1} parent=1 // pred_region
      %63 = dma.done [#allocation7], 128
    $region21: #{tpu_custom_call.1} parent=1 // pred_fallthru
      _
    // Predicated region
    $region22: #{tpu_custom_call.1} parent=1 // pred_check
      _
    $region23: #{tpu_custom_call.1} parent=1 // pred_check_branch
      %65 = sbr.rel (0) target = $region25
    $region24: #{tpu_custom_call.1} parent=1 // pred_region
      %66 = dma.done [#allocation10], 1024
    $region25: #{tpu_custom_call.1} parent=1 // pred_fallthru
      _
    // Predicated region
    $region26: #{tpu_custom_call.1} parent=1 // pred_check
      _
    $region27: #{tpu_custom_call.1} parent=1 // pred_check_branch
      %68 = sbr.rel (0) target = $region29
    $region28: #{tpu_custom_call.1} parent=1 // pred_region
      %69 = dma.done [#allocation10], 64
    $region29: #{tpu_custom_call.1} parent=1 // pred_fallthru
      _
    // Predicated region
    $region30: #{tpu_custom_call.1} parent=1 // pred_check
      _
    $region31: #{tpu_custom_call.1} parent=1 // pred_check_branch
      %71 = sbr.rel (0) target = $region33
    $region32: #{tpu_custom_call.1} parent=1 // pred_region
      %72 = dma.done [#allocation13], 64
    $region33: #{tpu_custom_call.1} parent=1 // pred_fallthru
      _
    %s73 = smul.u32 0, 8
    %s74 = sadd.s32 %s73, 0
    %s75 = sld [smem:[#allocation5 + %s74]]
    %s76 = sshrl.u32 %s75, 3
    %s77 = sand.u32 %s75, 7
    %s78 = smul.u32 %s76, 32
    %s79 = sadd.s32 %s77, %s78
    %s80 = smul.addr %s79, 16
    %s81 = scalar_lea.hbm %s5, %s80
    %s82 = smul.u32 0, 32
    %s83 = sadd.s32 0, %s82
    %s84 = scalar_lea.vmem [#allocation2], %s83
    %s86 = sshll.u32 %s84, 4
    %s87 = int_to_ptr.vmem [resolvable:$true] %s86
    %89 = dma.hbm_to_vmem [thread:$0]  %s81, 64, %s87, [#allocation3], 128, 128, 1
    %s90 = sadd.s32 0, 1
    %s91 = sadd.s32 %s73, %s90
    %s92 = sld [smem:[#allocation5 + %s91]]
    %s93 = sshrl.u32 %s92, 3
    %s94 = sand.u32 %s92, 7
    %s95 = smul.u32 %s93, 32
    %s96 = sadd.s32 %s94, %s95
    %s97 = smul.addr %s96, 16
    %s98 = scalar_lea.hbm %s5, %s97
    %s99 = sshrl.u32 %s90, 3
    %s100 = sand.u32 %s90, 7
    %s101 = smul.u32 %s99, 32
    %s102 = sadd.s32 %s100, %s101
    %s103 = scalar_lea.vmem [#allocation2], %s102
    %s105 = sshll.u32 %s103, 4
    %s106 = int_to_ptr.vmem [resolvable:$true] %s105
    %108 = dma.hbm_to_vmem [thread:$0]  %s98, 64, %s106, [#allocation3], 128, 128, 1
    %s109 = sadd.s32 0, 2
    %s110 = sadd.s32 %s73, %s109
    %s111 = sld [smem:[#allocation5 + %s110]]
    %s112 = sshrl.u32 %s111, 3
    %s113 = sand.u32 %s111, 7
    %s114 = smul.u32 %s112, 32
    %s115 = sadd.s32 %s113, %s114
    %s116 = smul.addr %s115, 16
    %s117 = scalar_lea.hbm %s5, %s116
    %s118 = sshrl.u32 %s109, 3
    %s119 = sand.u32 %s109, 7
    %s120 = smul.u32 %s118, 32
    %s121 = sadd.s32 %s119, %s120
    %s122 = scalar_lea.vmem [#allocation2], %s121
    %s124 = sshll.u32 %s122, 4
    %s125 = int_to_ptr.vmem [resolvable:$true] %s124
    %127 = dma.hbm_to_vmem [thread:$0]  %s117, 64, %s125, [#allocation3], 128, 128, 1
    %s128 = sadd.s32 0, 3
    %s129 = sadd.s32 %s73, %s128
    %s130 = sld [smem:[#allocation5 + %s129]]
    %s131 = sshrl.u32 %s130, 3
    %s132 = sand.u32 %s130, 7
    %s133 = smul.u32 %s131, 32
    %s134 = sadd.s32 %s132, %s133
    %s135 = smul.addr %s134, 16
    %s136 = scalar_lea.hbm %s5, %s135
    %s137 = sshrl.u32 %s128, 3
    %s138 = sand.u32 %s128, 7
    %s139 = smul.u32 %s137, 32
    %s140 = sadd.s32 %s138, %s139
    %s141 = scalar_lea.vmem [#allocation2], %s140
    %s143 = sshll.u32 %s141, 4
    %s144 = int_to_ptr.vmem [resolvable:$true] %s143
    %146 = dma.hbm_to_vmem [thread:$0]  %s136, 64, %s144, [#allocation3], 128, 128, 1
    %s147 = sadd.s32 0, 4
    %s148 = sadd.s32 %s73, %s147
    %s149 = sld [smem:[#allocation5 + %s148]]
    %s150 = sshrl.u32 %s149, 3
    %s151 = sand.u32 %s149, 7
    %s152 = smul.u32 %s150, 32
    %s153 = sadd.s32 %s151, %s152
    %s154 = smul.addr %s153, 16
    %s155 = scalar_lea.hbm %s5, %s154
    %s156 = sshrl.u32 %s147, 3
    %s157 = sand.u32 %s147, 7
    %s158 = smul.u32 %s156, 32
    %s159 = sadd.s32 %s157, %s158
    %s160 = scalar_lea.vmem [#allocation2], %s159
    %s162 = sshll.u32 %s160, 4
    %s163 = int_to_ptr.vmem [resolvable:$true] %s162
    %165 = dma.hbm_to_vmem [thread:$0]  %s155, 64, %s163, [#allocation3], 128, 128, 1
    %s166 = sadd.s32 0, 5
    %s167 = sadd.s32 %s73, %s166
    %s168 = sld [smem:[#allocation5 + %s167]]
    %s169 = sshrl.u32 %s168, 3
    %s170 = sand.u32 %s168, 7
    %s171 = smul.u32 %s169, 32
    %s172 = sadd.s32 %s170, %s171
    %s173 = smul.addr %s172, 16
    %s174 = scalar_lea.hbm %s5, %s173
    %s175 = sshrl.u32 %s166, 3
    %s176 = sand.u32 %s166, 7
    %s177 = smul.u32 %s175, 32
    %s178 = sadd.s32 %s176, %s177
    %s179 = scalar_lea.vmem [#allocation2], %s178
    %s181 = sshll.u32 %s179, 4
    %s182 = int_to_ptr.vmem [resolvable:$true] %s181
    %184 = dma.hbm_to_vmem [thread:$0]  %s174, 64, %s182, [#allocation3], 128, 128, 1
    %s185 = sadd.s32 0, 6
    %s186 = sadd.s32 %s73, %s185
    %s187 = sld [smem:[#allocation5 + %s186]]
    %s188 = sshrl.u32 %s187, 3
    %s189 = sand.u32 %s187, 7
    %s190 = smul.u32 %s188, 32
    %s191 = sadd.s32 %s189, %s190
    %s192 = smul.addr %s191, 16
    %s193 = scalar_lea.hbm %s5, %s192
    %s194 = sshrl.u32 %s185, 3
    %s195 = sand.u32 %s185, 7
    %s196 = smul.u32 %s194, 32
    %s197 = sadd.s32 %s195, %s196
    %s198 = scalar_lea.vmem [#allocation2], %s197
    %s200 = sshll.u32 %s198, 4
    %s201 = int_to_ptr.vmem [resolvable:$true] %s200
    %203 = dma.hbm_to_vmem [thread:$0]  %s193, 64, %s201, [#allocation3], 128, 128, 1
    %s204 = sadd.s32 0, 7
    %s205 = sadd.s32 %s73, %s204
    %s206 = sld [smem:[#allocation5 + %s205]]
    %s207 = sshrl.u32 %s206, 3
    %s208 = sand.u32 %s206, 7
    %s209 = smul.u32 %s207, 32
    %s210 = sadd.s32 %s208, %s209
    %s211 = smul.addr %s210, 16
    %s212 = scalar_lea.hbm %s5, %s211
    %s213 = sshrl.u32 %s204, 3
    %s214 = sand.u32 %s204, 7
    %s215 = smul.u32 %s213, 32
    %s216 = sadd.s32 %s214, %s215
    %s217 = scalar_lea.vmem [#allocation2], %s216
    %s219 = sshll.u32 %s217, 4
    %s220 = int_to_ptr.vmem [resolvable:$true] %s219
    %222 = dma.hbm_to_vmem [thread:$0]  %s212, 64, %s220, [#allocation3], 128, 128, 1
    %v223 = vld [vmem:[#allocation11] sm:$0xf]
    %v224 = vld [vmem:[#allocation12] sm:$0xf]
    %v225 = vld [vmem:[#allocation9] sm:$0xff]
    %v226 = vld [vmem:[#allocation9 + $0x8] sm:$0xff]
    %v227 = vld [vmem:[#allocation9 + $0x10] sm:$0xff]
    %v228 = vld [vmem:[#allocation9 + $0x18] sm:$0xff]
    %v229 = vld [vmem:[#allocation9 + $0x20] sm:$0xff]
    %v230 = vld [vmem:[#allocation9 + $0x28] sm:$0xff]
    %v231 = vld [vmem:[#allocation9 + $0x30] sm:$0xff]
    %v232 = vld [vmem:[#allocation9 + $0x38] sm:$0xff]
    %s233 = smul.u32 8, 1
    %s234 = smul.u32 %s233, 4
    %s235 = sshll.u32 %s234, 4
    %236 = dma.done [#allocation3], %s235
    %v237 = vld [vmem:[#allocation2] sm:$0xff]
    %v238 = vld [vmem:[#allocation2 + $0x8] sm:$0xff]
    %v239 = vld [vmem:[#allocation2 + $0x10] sm:$0xff]
    %v240 = vld [vmem:[#allocation2 + $0x18] sm:$0xff]
    %v241 = vld [vmem:[#allocation6] sm:$0xff]
    %vm242 = vcmask 130048
    %v244 = vsel %vm242, %v241, 0
    %246 = vmatprep.subr.mxu0 %v226
    %247 = vmatpush1.msra.mxu0 %v225
    %248 = vmatprep.subr.mxu0 %v230
    %249 = vmatpush1.msra.mxu0 %v229
    %250 = vmatprep.subr.mxu0 0.0
    %251 = vmatpush1.msra.mxu0 0.0
    %252 = vmatprep.subr.mxu0 0.0
    %253 = vmatpush1.msra.mxu0 0.0
    %254 = vmatprep.subr.mxu0 0.0
    %255 = vmatpush1.msra.mxu0 0.0
    %256 = vmatprep.subr.mxu0 0.0
    %257 = vmatpush1.msra.mxu0 0.0
    %258 = vmatprep.subr.mxu0 0.0
    %259 = vmatpush1.msra.mxu0 0.0
    %260 = vmatprep.subr.mxu0 0.0
    %261 = vmatpush1.msra.mxu0 0.0
    %262 = vmatprep.subr.mxu0 0.0
    %263 = vmatpush1.msra.mxu0 0.0
    %264 = vmatprep.subr.mxu0 0.0
    %265 = vmatpush1.msra.mxu0 0.0
    %266 = vmatprep.subr.mxu0 0.0
    %267 = vmatpush1.msra.mxu0 0.0
    %268 = vmatprep.subr.mxu0 0.0
    %269 = vmatpush1.msra.mxu0 0.0
    %270 = vmatprep.subr.mxu0 0.0
    %271 = vmatpush1.msra.mxu0 0.0
    %272 = vmatprep.subr.mxu0 0.0
    %273 = vmatpush1.msra.mxu0 0.0
    %274 = vmatprep.subr.mxu0 0.0
    %275 = vmatpush1.msra.mxu0 0.0
    %276 = vmatprep.subr.mxu0 0.0
    %277 = vmatpush1.msra.mxu0 0.0
    %278 = vmatprep.subr.mxu0 0.0
    %279 = vmatpush1.msra.mxu0 0.0
    %280 = vmatprep.subr.mxu0 0.0
    %281 = vmatpush1.msra.mxu0 0.0
    %282 = vmatprep.subr.mxu0 0.0
    %283 = vmatpush1.msra.mxu0 0.0
    %284 = vmatprep.subr.mxu0 0.0
    %285 = vmatpush1.msra.mxu0 0.0
    %286 = vmatprep.subr.mxu0 0.0
    %287 = vmatpush1.msra.mxu0 0.0
    %288 = vmatprep.subr.mxu0 0.0
    %289 = vmatpush1.msra.mxu0 0.0
    %290 = vmatprep.subr.mxu0 0.0
    %291 = vmatpush1.msra.mxu0 0.0
    %292 = vmatprep.subr.mxu0 0.0
    %293 = vmatpush1.msra.mxu0 0.0
    %294 = vmatprep.subr.mxu0 0.0
    %295 = vmatpush1.msra.mxu0 0.0
    %296 = vmatprep.subr.mxu0 0.0
    %297 = vmatpush1.msra.mxu0 0.0
    %298 = vmatprep.subr.mxu0 0.0
    %299 = vmatpush1.msra.mxu0 0.0
    %300 = vmatprep.subr.mxu0 0.0
    %301 = vmatpush1.msra.mxu0 0.0
    %302 = vmatprep.subr.mxu0 0.0
    %303 = vmatpush1.msra.mxu0 0.0
    %304 = vmatprep.subr.mxu0 0.0
    %305 = vmatpush1.msra.mxu0 0.0
    %306 = vmatprep.subr.mxu0 0.0
    %307 = vmatpush1.msra.mxu0 0.0
    %308 = vmatprep.subr.mxu0 0.0
    %309 = vmatpush1.msra.mxu0 0.0
    %310 = vmatprep.mubr.f32.mxu0 0.0
    %311 = vmatmul.mubr.f32.gmra.mrb[0].mxu0 %v244
    %v312 = vpop.f32.mrb[0].mxu0
    %v313 = vadd.f32 0.0, %v312
    %v314 = vpop.f32.mrb[0].mxu0
    %v315 = vadd.f32 0.0, %v314
    %316 = vdwg.mxu0
    %317 = vmatprep.subr.mxu0 %v228
    %318 = vmatpush1.msra.mxu0 %v227
    %319 = vmatprep.subr.mxu0 %v232
    %320 = vmatpush1.msra.mxu0 %v231
    %321 = vmatprep.subr.mxu0 0.0
    %322 = vmatpush1.msra.mxu0 0.0
    %323 = vmatprep.subr.mxu0 0.0
    %324 = vmatpush1.msra.mxu0 0.0
    %325 = vmatprep.subr.mxu0 0.0
    %326 = vmatpush1.msra.mxu0 0.0
    %327 = vmatprep.subr.mxu0 0.0
    %328 = vmatpush1.msra.mxu0 0.0
    %329 = vmatprep.subr.mxu0 0.0
    %330 = vmatpush1.msra.mxu0 0.0
    %331 = vmatprep.subr.mxu0 0.0
    %332 = vmatpush1.msra.mxu0 0.0
    %333 = vmatprep.subr.mxu0 0.0
    %334 = vmatpush1.msra.mxu0 0.0
    %335 = vmatprep.subr.mxu0 0.0
    %336 = vmatpush1.msra.mxu0 0.0
    %337 = vmatprep.subr.mxu0 0.0
    %338 = vmatpush1.msra.mxu0 0.0
    %339 = vmatprep.subr.mxu0 0.0
    %340 = vmatpush1.msra.mxu0 0.0
    %341 = vmatprep.subr.mxu0 0.0
    %342 = vmatpush1.msra.mxu0 0.0
    %343 = vmatprep.subr.mxu0 0.0
    %344 = vmatpush1.msra.mxu0 0.0
    %345 = vmatprep.subr.mxu0 0.0
    %346 = vmatpush1.msra.mxu0 0.0
    %347 = vmatprep.subr.mxu0 0.0
    %348 = vmatpush1.msra.mxu0 0.0
    %349 = vmatprep.subr.mxu0 0.0
    %350 = vmatpush1.msra.mxu0 0.0
    %351 = vmatprep.subr.mxu0 0.0
    %352 = vmatpush1.msra.mxu0 0.0
    %353 = vmatprep.subr.mxu0 0.0
    %354 = vmatpush1.msra.mxu0 0.0
    %355 = vmatprep.subr.mxu0 0.0
    %356 = vmatpush1.msra.mxu0 0.0
    %357 = vmatprep.subr.mxu0 0.0
    %358 = vmatpush1.msra.mxu0 0.0
    %359 = vmatprep.subr.mxu0 0.0
    %360 = vmatpush1.msra.mxu0 0.0
    %361 = vmatprep.subr.mxu0 0.0
    %362 = vmatpush1.msra.mxu0 0.0
    %363 = vmatprep.subr.mxu0 0.0
    %364 = vmatpush1.msra.mxu0 0.0
    %365 = vmatprep.subr.mxu0 0.0
    %366 = vmatpush1.msra.mxu0 0.0
    %367 = vmatprep.subr.mxu0 0.0
    %368 = vmatpush1.msra.mxu0 0.0
    %369 = vmatprep.subr.mxu0 0.0
    %370 = vmatpush1.msra.mxu0 0.0
    %371 = vmatprep.subr.mxu0 0.0
    %372 = vmatpush1.msra.mxu0 0.0
    %373 = vmatprep.subr.mxu0 0.0
    %374 = vmatpush1.msra.mxu0 0.0
    %375 = vmatprep.subr.mxu0 0.0
    %376 = vmatpush1.msra.mxu0 0.0
    %377 = vmatprep.subr.mxu0 0.0
    %378 = vmatpush1.msra.mxu0 0.0
    %379 = vmatprep.subr.mxu0 0.0
    %380 = vmatpush1.msra.mxu0 0.0
    %381 = vmatprep.mubr.f32.mxu0 0.0
    %382 = vmatmul.mubr.f32.gmra.mrb[0].mxu0 %v244
    %v383 = vpop.f32.mrb[0].mxu0
    %v384 = vadd.f32 0.0, %v383
    %v385 = vpop.f32.mrb[0].mxu0
    %v386 = vadd.f32 0.0, %v385
    %387 = vdwg.mxu0
    %v388 = vadd.f32 %v237, %v313
    %v389 = vadd.f32 %v238, %v315
    %v390 = vadd.f32 %v239, %v384
    %v391 = vadd.f32 %v240, %v386
    %v392 = vadd.f32 %v388, %v389
    %v393 = vadd.f32 %v392, %v390
    %v394 = vadd.f32 %v393, %v391
    %395 = vadd.xlane.f32.xlu0 %v394
    %v396 = vpop.xlane.xlu0 %395
    %v397 = vrcp.pop 512.0
    %v398 = vmul.f32 %v396, %v397
    %v399 = vsub.f32 %v388, %v398
    %v400 = vsub.f32 %v389, %v398
    %v401 = vsub.f32 %v390, %v398
    %v402 = vsub.f32 %v391, %v398
    %v403 = vmul.f32 %v399, %v399
    %v404 = vmul.f32 %v400, %v400
    %v405 = vmul.f32 %v401, %v401
    %v406 = vmul.f32 %v402, %v402
    %v407 = vadd.f32 %v403, %v404
    %v408 = vadd.f32 %v407, %v405
    %v409 = vadd.f32 %v408, %v406
    %410 = vadd.xlane.f32.xlu0 %v409
    %v411 = vpop.xlane.xlu0 %410
    %v412 = vmul.f32 %v411, %v397
    %v413 = vadd.f32 %v412, 1e-05
    %v414 = vrsqrt.pop %v413
    %v415 = vmul.f32 %v399, %v414
    %v416 = vmul.f32 %v400, %v414
    %v417 = vmul.f32 %v401, %v414
    %v418 = vmul.f32 %v402, %v414
    %v420 = vlaneseq
    %v421 = vshrl.u32 %v420, 7
    %v422 = vsub.s32 0, %v421
    %v423 = vrot.slane %v223, %v422
    %v424 = vlaneseq
    %v425 = vshrl.u32 %v424, 7
    %v426 = vsub.s32 1, %v425
    %v427 = vrot.slane %v223, %v426
    %v428 = vlaneseq
    %v429 = vshrl.u32 %v428, 7
    %v430 = vsub.s32 2, %v429
    %v431 = vrot.slane %v223, %v430
    %v432 = vlaneseq
    %v433 = vshrl.u32 %v432, 7
    %v434 = vsub.s32 3, %v433
    %v435 = vrot.slane %v223, %v434
    %v440 = vmul.f32 %v415, %v423
    %v441 = vmul.f32 %v416, %v427
    %v442 = vmul.f32 %v417, %v431
    %v443 = vmul.f32 %v418, %v435
    %v445 = vlaneseq
    %v446 = vshrl.u32 %v445, 7
    %v447 = vsub.s32 0, %v446
    %v448 = vrot.slane %v224, %v447
    %v449 = vlaneseq
    %v450 = vshrl.u32 %v449, 7
    %v451 = vsub.s32 1, %v450
    %v452 = vrot.slane %v224, %v451
    %v453 = vlaneseq
    %v454 = vshrl.u32 %v453, 7
    %v455 = vsub.s32 2, %v454
    %v456 = vrot.slane %v224, %v455
    %v457 = vlaneseq
    %v458 = vshrl.u32 %v457, 7
    %v459 = vsub.s32 3, %v458
    %v460 = vrot.slane %v224, %v459
    %v465 = vadd.f32 %v440, %v448
    %v466 = vadd.f32 %v441, %v452
    %v467 = vadd.f32 %v442, %v456
    %v468 = vadd.f32 %v443, %v460
    %469 = vst [vmem:[#allocation14] sm:$0xff] %v465
    %470 = vst [vmem:[#allocation14 + $0x8] sm:$0xff] %v466
    %471 = vst [vmem:[#allocation14 + $0x10] sm:$0xff] %v467
    %472 = vst [vmem:[#allocation14 + $0x18] sm:$0xff] %v468
    // Predicated region
    $region34: #{tpu_custom_call.1} parent=1 // pred_check
      _
    $region35: #{tpu_custom_call.1} parent=1 // pred_check_branch
      %474 = sbr.rel (0) target = $region37
    $region36: #{tpu_custom_call.1} parent=1 // pred_region
      %s476 = ssub.s32 512, 512
      %477 = vsyncadd [#allocation8], %s476
      %s479 = sshll.u32 [#allocation14], 4
      %s480 = int_to_ptr.vmem [resolvable:$true] %s479
      %482 = dma.vmem_to_hbm [thread:$0]  %s480, 512, %s6, [#allocation8]
    $region37: #{tpu_custom_call.1} parent=1 // pred_fallthru
      _
    // Predicated region
    $region38: #{tpu_custom_call.1} parent=1 // pred_check
      _
    $region39: #{tpu_custom_call.1} parent=1 // pred_check_branch
      %484 = sbr.rel (0) target = $region41
    $region40: #{tpu_custom_call.1} parent=1 // pred_region
      %485 = dma.done [#allocation8], 512
    $region41: #{tpu_custom_call.1} parent=1 // pred_fallthru
      _
    %486 = vsyncpa [#allocation7], 1
    %487 = vsyncpa [#allocation10], 1
    %488 = vsyncpa [#allocation13], 1
    %489 = vsyncpa [#allocation8], 1
  %490 = vsyncmov [#allocation3]
  %s491 = vpop.sfrf %490
  %p492 = scmp.eq.s32.totalorder %s491, 0
  %p493 = pneg %p492
  %495 = shalt.err (%p493)
  %s496 = scalar_lea.sflag [#allocation3], 1
  %497 = vsyncmov %s496
  %s498 = vpop.sfrf %497
  %p499 = scmp.eq.s32.totalorder %s498, 0
  %p500 = pneg %p499
  %502 = shalt.err (%p500)

</llo_original>
